<compile_context>
chip_gen: v7x
topology: tpu7x:2x2x1
jax: 0.10.0
libtpu: 0.0.40
codegen_flags: <defaults>
</compile_context>

<pallas_src>
import math
import jax
import jax.numpy as jnp
from jax.experimental import pallas as pl
from jax.experimental.pallas import tpu as pltpu

BN_EPS = 1e-5


def mlp_kernel(x_ref, w1_ref, gamma_ref, beta_ref, w2_ref, o_ref, acc_ref):
    h_idx = pl.program_id(0)

    @pl.when(h_idx == 0)
    def _():
        acc_ref[...] = jnp.zeros_like(acc_ref)

    # ln1 (bias omitted -- cancels under train-mode BN): x @ W1[:, tile]
    # bf16 MXU operands, f32 accumulation.
    h = jnp.dot(x_ref[...], w1_ref[...],
                preferred_element_type=jnp.float32)            # (B, TH) f32

    # BatchNorm1d, training-mode statistics over the batch axis.
    # Stats are per hidden column; each tile sees the full batch -> exact.
    mean = jnp.mean(h, axis=0, keepdims=True)                  # (1, TH)
    d = h - mean
    var = jnp.mean(d * d, axis=0, keepdims=True)               # biased var
    # Fold BN affine into a single per-column scale/shift (2 VPU ops on (B,TH)).
    scale = gamma_ref[...] * jax.lax.rsqrt(var + BN_EPS)       # (1, TH)
    shift = beta_ref[...] - mean * scale                       # (1, TH)

    # ReLU
    a = jnp.maximum(h * scale + shift, 0.0)                    # (B, TH) f32

    # ln2 partial-sum accumulate: acc += a @ W2[tile, :]
    acc_ref[...] += jnp.dot(a.astype(jnp.bfloat16), w2_ref[...],
                            preferred_element_type=jnp.float32)

    @pl.when(h_idx == pl.num_programs(0) - 1)
    def _():
        o_ref[...] = acc_ref[...].astype(o_ref.dtype)


def _round_up(x, m):
    return (x + m - 1) // m * m


def _pick_hidden_tile(H, max_tile=512):
    # Single tile for small H; otherwise a multiple of 128 that divides H.
    if H <= max_tile or H % 128 != 0:
        return H
    th = max_tile
    while H % th != 0:
        th -= 128
    return max(th, 128)


def mlp_forward(x, w1, gamma, beta, w2, b1=None):
    # b1 (ln1 bias) is accepted for interface parity but unused: under
    # training-mode BatchNorm it cancels exactly and contributes nothing.
    del b1
    B, D = x.shape
    H = w1.shape[1]
    O = w2.shape[1]

    TH = _pick_hidden_tile(H)
    n_h = H // TH

    # Lane-dense output: pad the output feature dim to a multiple of 128
    # (zero-padded W2 columns), slice back in the wrapper.
    O_pad = max(128, _round_up(O, 128))
    w2_p = jnp.zeros((H, O_pad), jnp.bfloat16).at[:, :O].set(
        w2.astype(jnp.bfloat16))

    # bf16 MXU operands; BN/ReLU math stays f32 inside the kernel.
    x_bf = x.astype(jnp.bfloat16)
    w1_bf = w1.astype(jnp.bfloat16)
    gamma2 = gamma.reshape(1, H).astype(jnp.float32)
    beta2 = beta.reshape(1, H).astype(jnp.float32)

    out_p = pl.pallas_call(
        mlp_kernel,
        out_shape=jax.ShapeDtypeStruct((B, O_pad), jnp.float32),
        grid_spec=pltpu.PrefetchScalarGridSpec(
            num_scalar_prefetch=0,
            grid=(n_h,),
            in_specs=[
                pl.BlockSpec((B, D), lambda h: (0, 0)),      # x (resident)
                pl.BlockSpec((D, TH), lambda h: (0, h)),     # W1 tile
                pl.BlockSpec((1, TH), lambda h: (0, h)),     # gamma tile
                pl.BlockSpec((1, TH), lambda h: (0, h)),     # beta tile
                pl.BlockSpec((TH, O_pad), lambda h: (h, 0)),  # W2 tile
            ],
            out_specs=pl.BlockSpec((B, O_pad), lambda h: (0, 0)),
            scratch_shapes=[pltpu.VMEM((B, O_pad), jnp.float32)],
        ),
        compiler_params=pltpu.CompilerParams(
            dimension_semantics=("arbitrary",),   # hidden axis is a reduction
            vmem_limit_bytes=32 * 1024 * 1024,    # safe on v5e/v6e/v7x
        ),
    )(x_bf, w1_bf, gamma2, beta2, w2_p)

    return out_p[:, :O]


def trunc_normal(key, shape, std, a=-1.0, b=1.0):
    # matches torch.nn.init._no_grad_trunc_normal_(mean=0, std, a, b)
    z = jax.random.truncated_normal(key, lower=a / std, upper=b / std,
                                    shape=shape, dtype=jnp.float32)
    return z * std


if __name__ == "__main__":
    # Small shapes consistent with MLP(dim, hidden_dim, out_dim)
    B, DIM, HIDDEN, OUT = 8, 32, 64, 16

    key = jax.random.PRNGKey(0)
    k_x, k_w1, k_w2 = jax.random.split(key, 3)

    # Parameters (deterministic, mimicking MLP._reset_parameters_jax)
    std1 = 1.0 / math.sqrt(DIM)
    std2 = 1.0 / math.sqrt(HIDDEN)
    w1 = trunc_normal(k_w1, (DIM, HIDDEN), std1)     # ln1.weight^T
    b1 = jnp.zeros((HIDDEN,), jnp.float32)           # ln1.bias (zeros; cancels in BN)
    gamma = jnp.ones((HIDDEN,), jnp.float32)         # bn.weight
    beta = jnp.zeros((HIDDEN,), jnp.float32)         # bn.bias
    w2 = trunc_normal(k_w2, (HIDDEN, OUT), std2)     # ln2.weight^T (no bias)

    x = jax.random.normal(k_x, (B, DIM), jnp.float32)

    out = mlp_forward(x, w1, gamma, beta, w2, b1=b1)
    jax.block_until_ready(out)

    # Reference 1: exact mirror of the kernel math (bf16 MXU operands, f32 stats)
    xb, w1b, w2b = (t.astype(jnp.bfloat16) for t in (x, w1, w2))
    h = jnp.dot(xb, w1b, preferred_element_type=jnp.float32)
    mu = h.mean(0, keepdims=True)
    vv = ((h - mu) ** 2).mean(0, keepdims=True)
    sc = gamma.reshape(1, -1) * jax.lax.rsqrt(vv + BN_EPS)
    sh = beta.reshape(1, -1) - mu * sc
    a = jnp.maximum(h * sc + sh, 0.0)
    ref_bf = jnp.dot(a.astype(jnp.bfloat16), w2b, preferred_element_type=jnp.float32)
    assert jnp.allclose(out, ref_bf, atol=1e-3, rtol=1e-3), "mismatch vs bf16 reference"

    # Reference 2: full-f32 PyTorch-semantics reference (loose tol for bf16 MXU)
    h32 = x @ w1 + b1
    mu32 = h32.mean(0, keepdims=True)
    vv32 = ((h32 - mu32) ** 2).mean(0, keepdims=True)
    ref32 = jnp.maximum((h32 - mu32) / jnp.sqrt(vv32 + BN_EPS) * gamma + beta, 0.0) @ w2
    assert jnp.allclose(out, ref32, atol=3e-2, rtol=3e-2), "mismatch vs f32 reference"

    print("KERNEL_OK")
</pallas_src>

<mosaic_0001>
module attributes {stable_mosaic.version = 11 : i64} {
  func.func @mlp_kernel(%arg0: i32, %arg1: memref<8x32xbf16, #tpu.memory_space<vmem>>, %arg2: memref<32x64xbf16, #tpu.memory_space<vmem>>, %arg3: memref<1x64xf32, #tpu.memory_space<vmem>>, %arg4: memref<1x64xf32, #tpu.memory_space<vmem>>, %arg5: memref<64x128xbf16, #tpu.memory_space<vmem>>, %arg6: memref<8x128xf32, #tpu.memory_space<vmem>>, %arg7: memref<8x128xf32, #tpu.memory_space<vmem>>) attributes {dimension_semantics = [#tpu.dimension_semantics<arbitrary>], iteration_bounds = array<i64: 1>, scalar_prefetch = 0 : i64, scratch_operands = 1 : i64, tpu.core_type = #tpu.core_type<tc>, window_params = [{pipeline_mode = #tpu.pipeline_mode<synchronous>, transform_indices = @transform_0, window_bounds = array<i64: 8, 32>}, {transform_indices = @transform_1, window_bounds = array<i64: 32, 64>}, {transform_indices = @transform_2, window_bounds = array<i64: 1, 64>}, {transform_indices = @transform_3, window_bounds = array<i64: 1, 64>}, {transform_indices = @transform_4, window_bounds = array<i64: 64, 128>}, {pipeline_mode = #tpu.pipeline_mode<synchronous>, transform_indices = @transform_5, window_bounds = array<i64: 8, 128>}]} {
    %c0_i32 = arith.constant 0 : i32
    %0 = arith.cmpi eq, %arg0, %c0_i32 : i32
    %1 = arith.extui %0 : i1 to i32
    %c0_i32_0 = arith.constant 0 : i32
    %2 = arith.cmpi ne, %1, %c0_i32_0 : i32
    scf.if %2 {
      %cst_23 = arith.constant 0.000000e+00 : f32
      %40 = vector.broadcast %cst_23 : f32 to vector<8x128xf32>
      %c0_24 = arith.constant 0 : index
      %c0_25 = arith.constant 0 : index
      %41 = vector.load %arg7[%c0_24, %c0_25] : memref<8x128xf32, #tpu.memory_space<vmem>>, vector<8x128xf32>
      tpu.vector_store %arg7[%c0_24, %c0_25], %40 {strides = array<i32>} : memref<8x128xf32, #tpu.memory_space<vmem>>, vector<8x128xf32>,
    } else {
    }
    %c0 = arith.constant 0 : index
    %c0_1 = arith.constant 0 : index
    %3 = vector.load %arg1[%c0, %c0_1] : memref<8x32xbf16, #tpu.memory_space<vmem>>, vector<8x32xbf16>
    %c0_2 = arith.constant 0 : index
    %c0_3 = arith.constant 0 : index
    %4 = vector.load %arg2[%c0_2, %c0_3] : memref<32x64xbf16, #tpu.memory_space<vmem>>, vector<32x64xbf16>
    %cst = arith.constant dense<0.000000e+00> : vector<8x64xf32>
    %5 = tpu.matmul %3, %4, %cst {dimension_numbers = #tpu.dot_dimension_numbers<[1], [0], [0], [1], [0, 0, 1, 1], [], []>} : vector<8x32xbf16>, vector<32x64xbf16>, vector<8x64xf32> -> vector<8x64xf32>
    %cst_4 = arith.constant dense<0.000000e+00> : vector<64xf32>
    %6 = vector.multi_reduction <add>, %5, %cst_4 [0] : vector<8x64xf32> to vector<64xf32>
    %7 = vector.shape_cast %6 : vector<64xf32> to vector<1x64xf32>
    %cst_5 = arith.constant 8.000000e+00 : f32
    %8 = vector.broadcast %cst_5 : f32 to vector<1x64xf32>
    %9 = arith.divf %7, %8 : vector<1x64xf32>
    %10 = vector.broadcast %9 : vector<1x64xf32> to vector<8x64xf32>
    %11 = arith.subf %5, %10 : vector<8x64xf32>
    %12 = arith.mulf %11, %11 : vector<8x64xf32>
    %cst_6 = arith.constant dense<0.000000e+00> : vector<64xf32>
    %13 = vector.multi_reduction <add>, %12, %cst_6 [0] : vector<8x64xf32> to vector<64xf32>
    %14 = vector.shape_cast %13 : vector<64xf32> to vector<1x64xf32>
    %cst_7 = arith.constant 8.000000e+00 : f32
    %15 = vector.broadcast %cst_7 : f32 to vector<1x64xf32>
    %16 = arith.divf %14, %15 : vector<1x64xf32>
    %c0_8 = arith.constant 0 : index
    %c0_9 = arith.constant 0 : index
    %17 = vector.load %arg3[%c0_8, %c0_9] : memref<1x64xf32, #tpu.memory_space<vmem>>, vector<1x64xf32>
    %cst_10 = arith.constant 9.99999974E-6 : f32
    %18 = vector.broadcast %cst_10 : f32 to vector<1x64xf32>
    %19 = arith.addf %16, %18 : vector<1x64xf32>
    %20 = math.rsqrt %19 : vector<1x64xf32>
    %21 = arith.mulf %17, %20 : vector<1x64xf32>
    %c0_11 = arith.constant 0 : index
    %c0_12 = arith.constant 0 : index
    %22 = vector.load %arg4[%c0_11, %c0_12] : memref<1x64xf32, #tpu.memory_space<vmem>>, vector<1x64xf32>
    %23 = arith.mulf %9, %21 : vector<1x64xf32>
    %24 = arith.subf %22, %23 : vector<1x64xf32>
    %25 = vector.broadcast %21 : vector<1x64xf32> to vector<8x64xf32>
    %26 = arith.mulf %5, %25 : vector<8x64xf32>
    %27 = vector.broadcast %24 : vector<1x64xf32> to vector<8x64xf32>
    %28 = arith.addf %26, %27 : vector<8x64xf32>
    %cst_13 = arith.constant 0.000000e+00 : f32
    %29 = vector.broadcast %cst_13 : f32 to vector<8x64xf32>
    %30 = arith.maximumf %28, %29 : vector<8x64xf32>
    %c0_14 = arith.constant 0 : index
    %c0_15 = arith.constant 0 : index
    %31 = vector.load %arg7[%c0_14, %c0_15] : memref<8x128xf32, #tpu.memory_space<vmem>>, vector<8x128xf32>
    %32 = arith.truncf %30 : vector<8x64xf32> to vector<8x64xbf16>
    %c0_16 = arith.constant 0 : index
    %c0_17 = arith.constant 0 : index
    %33 = vector.load %arg5[%c0_16, %c0_17] : memref<64x128xbf16, #tpu.memory_space<vmem>>, vector<64x128xbf16>
    %cst_18 = arith.constant dense<0.000000e+00> : vector<8x128xf32>
    %34 = tpu.matmul %32, %33, %cst_18 {dimension_numbers = #tpu.dot_dimension_numbers<[1], [0], [0], [1], [0, 0, 1, 1], [], []>} : vector<8x64xbf16>, vector<64x128xbf16>, vector<8x128xf32> -> vector<8x128xf32>
    %35 = arith.addf %31, %34 : vector<8x128xf32>
    %c0_19 = arith.constant 0 : index
    %c0_20 = arith.constant 0 : index
    %36 = vector.load %arg7[%c0_19, %c0_20] : memref<8x128xf32, #tpu.memory_space<vmem>>, vector<8x128xf32>
    tpu.vector_store %arg7[%c0_19, %c0_20], %35 {strides = array<i32>} : memref<8x128xf32, #tpu.memory_space<vmem>>, vector<8x128xf32>,
    %c0_i32_21 = arith.constant 0 : i32
    %37 = arith.cmpi eq, %arg0, %c0_i32_21 : i32
    %38 = arith.extui %37 : i1 to i32
    %c0_i32_22 = arith.constant 0 : i32
    %39 = arith.cmpi ne, %38, %c0_i32_22 : i32
    scf.if %39 {
      %c0_23 = arith.constant 0 : index
      %c0_24 = arith.constant 0 : index
      %40 = vector.load %arg7[%c0_23, %c0_24] : memref<8x128xf32, #tpu.memory_space<vmem>>, vector<8x128xf32>
      %c0_25 = arith.constant 0 : index
      %c0_26 = arith.constant 0 : index
      %41 = vector.load %arg6[%c0_25, %c0_26] : memref<8x128xf32, #tpu.memory_space<vmem>>, vector<8x128xf32>
      tpu.vector_store %arg6[%c0_25, %c0_26], %40 {strides = array<i32>} : memref<8x128xf32, #tpu.memory_space<vmem>>, vector<8x128xf32>,
    } else {
    }
    return
  }
  func.func @transform_0(%arg0: i32) -> (i32, i32) {
    %c0_i32 = arith.constant 0 : i32
    %c0_i32_0 = arith.constant 0 : i32
    %c0_i32_1 = arith.constant 0 : i32
    return %c0_i32, %c0_i32_0 : i32, i32
  }
  func.func @transform_1(%arg0: i32) -> (i32, i32) {
    %c0_i32 = arith.constant 0 : i32
    %c0_i32_0 = arith.constant 0 : i32
    return %c0_i32, %arg0 : i32, i32
  }
  func.func @transform_2(%arg0: i32) -> (i32, i32) {
    %c0_i32 = arith.constant 0 : i32
    %c0_i32_0 = arith.constant 0 : i32
    return %c0_i32, %arg0 : i32, i32
  }
  func.func @transform_3(%arg0: i32) -> (i32, i32) {
    %c0_i32 = arith.constant 0 : i32
    %c0_i32_0 = arith.constant 0 : i32
    return %c0_i32, %arg0 : i32, i32
  }
  func.func @transform_4(%arg0: i32) -> (i32, i32) {
    %c0_i32 = arith.constant 0 : i32
    %c0_i32_0 = arith.constant 0 : i32
    return %arg0, %c0_i32 : i32, i32
  }
  func.func @transform_5(%arg0: i32) -> (i32, i32) {
    %c0_i32 = arith.constant 0 : i32
    %c0_i32_0 = arith.constant 0 : i32
    %c0_i32_1 = arith.constant 0 : i32
    return %c0_i32, %c0_i32_0 : i32, i32
  }
}

</mosaic_0001>

<llo_original>
// kernel: tpu_custom_call.1
$region0: #{tpu_custom_call.1}
  #allocation0 [shape = 'u32[]', space=smem, size = 0x4, offset = 0x4, fixed_abs, tag = 'smem constant byte address 0x4 - core index']
  #allocation1 [shape = 'u32[144,128]{1,0:T(1,128)}', space=vmem, size = 0x12000, scoped, tag = 'internal scratch']
  #allocation2 [shape = 'f32[8,128]{1,0:T(8,128)}', space=vmem, size = 0x1000, scoped, tag = 'scratch operand']
  %s0 = inlined_call_operand.hbm [shape: bf16[8,32], index: 0, kind: input, shape index: {}]
  %s1 = inlined_call_operand.hbm [shape: bf16[32,64], index: 1, kind: input, shape index: {}]
  %s2 = inlined_call_operand.vmem [shape: f32[1,64], index: 2, kind: input, shape index: {}]
  %s3 = inlined_call_operand.vmem [shape: f32[1,64], index: 3, kind: input, shape index: {}]
  %s4 = inlined_call_operand.hbm [shape: bf16[64,128], index: 4, kind: input, shape index: {}]
  %s5 = inlined_call_operand.hbm [shape: f32[8,128], index: 5, kind: output, shape index: {}]
  %s6 = sld [smem:[#allocation0]]
  $region50: #{tpu_custom_call.1} parent=0
    _
  %s8 = ssub.s32 1, %s6
  %s9 = scalar_select 0, %s8, %s6
  $region1: #{tpu_custom_call.1} parent=0
    #allocation3 [shape = 'u8[2048]{0}', space=vmem, size = 0x800, scoped, tag = 'input window, operand 0, single buffered']
    #allocation4 [shape = 's32[1]{0}', space=sflag, size = 0x4, scoped, tag = 'scoped memory for tpu_custom_call.1']
    #allocation5 [shape = 's32[1]{0}', space=sflag, size = 0x4, scoped, tag = 'scoped memory for tpu_custom_call.1']
    #allocation6 [shape = 'u8[8192]{0}', space=vmem, size = 0x2000, scoped, tag = 'input window, operand 1, single buffered']
    #allocation7 [shape = 's32[1]{0}', space=sflag, size = 0x4, scoped, tag = 'scoped memory for tpu_custom_call.1']
    #allocation8 [shape = 'u8[16384]{0}', space=vmem, size = 0x4000, scoped, tag = 'input window, operand 4, single buffered']
    #allocation9 [shape = 'u8[4096]{0}', space=vmem, size = 0x1000, scoped, tag = 'output window, operand 0, single buffered']
    %10 = vsyncpa [#allocation4], 0
    %11 = vsyncpa [#allocation7], 0
    %12 = vsyncpa [#allocation5], 0
    // Predicated region
    $region2: #{tpu_custom_call.1} parent=1 // pred_check
      _
    $region3: #{tpu_custom_call.1} parent=1 // pred_check_branch
      %14 = sbr.rel (0) target = $region5
    $region4: #{tpu_custom_call.1} parent=1 // pred_region
      %s16 = ssub.s32 64, 64
      %17 = vsyncadd [#allocation4], %s16
      %s19 = sshll.u32 [#allocation3], 4
      %s20 = int_to_ptr.vmem [resolvable:$true] %s19
      %22 = dma.hbm_to_vmem [thread:$0]  %s0, 64, %s20, [#allocation4]
    $region5: #{tpu_custom_call.1} parent=1 // pred_fallthru
      _
    // Predicated region
    $region6: #{tpu_custom_call.1} parent=1 // pred_check
      _
    $region7: #{tpu_custom_call.1} parent=1 // pred_check_branch
      %24 = sbr.rel (0) target = $region9
    $region8: #{tpu_custom_call.1} parent=1 // pred_region
      %s26 = ssub.s32 256, 256
      %27 = vsyncadd [#allocation7], %s26
      %s28 = sshll.u32 [#allocation6], 4
      %s29 = int_to_ptr.vmem [resolvable:$true] %s28
      %34 = dma.hbm_to_vmem [thread:$0]  %s1, 256, %s29, [#allocation7], 64, 64, 4
    $region9: #{tpu_custom_call.1} parent=1 // pred_fallthru
      _
    // Predicated region
    $region10: #{tpu_custom_call.1} parent=1 // pred_check
      _
    $region11: #{tpu_custom_call.1} parent=1 // pred_check_branch
      %36 = sbr.rel (0) target = $region13
    $region12: #{tpu_custom_call.1} parent=1 // pred_region
      _
    $region13: #{tpu_custom_call.1} parent=1 // pred_fallthru
      _
    // Predicated region
    $region14: #{tpu_custom_call.1} parent=1 // pred_check
      _
    $region15: #{tpu_custom_call.1} parent=1 // pred_check_branch
      %38 = sbr.rel (0) target = $region17
    $region16: #{tpu_custom_call.1} parent=1 // pred_region
      _
    $region17: #{tpu_custom_call.1} parent=1 // pred_fallthru
      _
    // Predicated region
    $region18: #{tpu_custom_call.1} parent=1 // pred_check
      _
    $region19: #{tpu_custom_call.1} parent=1 // pred_check_branch
      %40 = sbr.rel (0) target = $region21
    $region20: #{tpu_custom_call.1} parent=1 // pred_region
      %s42 = ssub.s32 512, 512
      %43 = vsyncadd [#allocation7], %s42
      %s44 = sshll.u32 [#allocation8], 4
      %s45 = int_to_ptr.vmem [resolvable:$true] %s44
      %50 = dma.hbm_to_vmem [thread:$0]  %s4, 512, %s45, [#allocation7], 64, 64, 4
    $region21: #{tpu_custom_call.1} parent=1 // pred_fallthru
      _
    // Predicated region
    $region22: #{tpu_custom_call.1} parent=1 // pred_check
      _
    $region23: #{tpu_custom_call.1} parent=1 // pred_check_branch
      %52 = sbr.rel (0) target = $region25
    $region24: #{tpu_custom_call.1} parent=1 // pred_region
      %53 = dma.done [#allocation4], 64
    $region25: #{tpu_custom_call.1} parent=1 // pred_fallthru
      _
    // Predicated region
    $region26: #{tpu_custom_call.1} parent=1 // pred_check
      _
    $region27: #{tpu_custom_call.1} parent=1 // pred_check_branch
      %55 = sbr.rel (0) target = $region29
    $region28: #{tpu_custom_call.1} parent=1 // pred_region
      %56 = dma.done [#allocation7], 256
    $region29: #{tpu_custom_call.1} parent=1 // pred_fallthru
      _
    // Predicated region
    $region30: #{tpu_custom_call.1} parent=1 // pred_check
      _
    $region31: #{tpu_custom_call.1} parent=1 // pred_check_branch
      %58 = sbr.rel (0) target = $region33
    $region32: #{tpu_custom_call.1} parent=1 // pred_region
      %59 = dma.done [#allocation7], 512
    $region33: #{tpu_custom_call.1} parent=1 // pred_fallthru
      _
    %p61 = scmp.eq.s32.totalorder 0, 0
    // Predicated region
    $region34: #{tpu_custom_call.1} parent=1 // pred_check
      %p62 = pneg %p61
    $region35: #{tpu_custom_call.1} parent=1 // pred_check_branch
      %64 = sbr.rel (%p62) target = $region37
    $region36: #{tpu_custom_call.1} parent=1 // pred_region
      %65 = vst [vmem:[#allocation2] sm:$0xff] 0.0
    $region37: #{tpu_custom_call.1} parent=1 // pred_fallthru
      _
    %v66 = vld [vmem:[#allocation3] sm:$0xf]
    %v67 = vld [vmem:[#allocation6] sm:$0xf]
    %v68 = vld [vmem:[#allocation6 + $0x4] sm:$0xf]
    %v69 = vld [vmem:[#allocation6 + $0x8] sm:$0xf]
    %v70 = vld [vmem:[#allocation6 + $0xc] sm:$0xf]
    %v75 = vunpack.c.l.b16 %v67
    %v76 = vunpack.c.l.b16 %v68
    %v77 = vunpack.c.l.b16 %v69
    %v78 = vunpack.c.l.b16 %v70
    %v79 = vpack.c.b16 %v76, %v75
    %v80 = vpack.c.b16 %v78, %v77
    %vm83 = vcmask 261120
    %v85 = vsel %vm83, %v66, 0
    %87 = vmatprep.subr.bf16.mxu0 0
    %88 = vmatpush1.bf16.msra.mxu0 %v79
    %89 = vmatprep.subr.bf16.mxu0 0
    %90 = vmatpush1.bf16.msra.mxu0 %v80
    %91 = vmatprep.subr.bf16.mxu0 0
    %92 = vmatpush1.bf16.msra.mxu0 0
    %93 = vmatprep.subr.bf16.mxu0 0
    %94 = vmatpush1.bf16.msra.mxu0 0
    %95 = vmatprep.subr.bf16.mxu0 0
    %96 = vmatpush1.bf16.msra.mxu0 0
    %97 = vmatprep.subr.bf16.mxu0 0
    %98 = vmatpush1.bf16.msra.mxu0 0
    %99 = vmatprep.subr.bf16.mxu0 0
    %100 = vmatpush1.bf16.msra.mxu0 0
    %101 = vmatprep.subr.bf16.mxu0 0
    %102 = vmatpush1.bf16.msra.mxu0 0
    %103 = vmatprep.subr.bf16.mxu0 0
    %104 = vmatpush1.bf16.msra.mxu0 0
    %105 = vmatprep.subr.bf16.mxu0 0
    %106 = vmatpush1.bf16.msra.mxu0 0
    %107 = vmatprep.subr.bf16.mxu0 0
    %108 = vmatpush1.bf16.msra.mxu0 0
    %109 = vmatprep.subr.bf16.mxu0 0
    %110 = vmatpush1.bf16.msra.mxu0 0
    %111 = vmatprep.subr.bf16.mxu0 0
    %112 = vmatpush1.bf16.msra.mxu0 0
    %113 = vmatprep.subr.bf16.mxu0 0
    %114 = vmatpush1.bf16.msra.mxu0 0
    %115 = vmatprep.subr.bf16.mxu0 0
    %116 = vmatpush1.bf16.msra.mxu0 0
    %117 = vmatprep.subr.bf16.mxu0 0
    %118 = vmatpush1.bf16.msra.mxu0 0
    %119 = vmatprep.mubr.bf16.mxu0 0
    %120 = vmatmul.mubr.bf16.gmra.mrb[0].mxu0 %v85
    %v121 = vpop.f32.mrb[0].mxu0
    %v122 = vadd.f32 0.0, %v121
    %v123 = vpop.f32.mrb[0].mxu0
    %v124 = vpop.f32.mrb[0].mxu0
    %v125 = vpop.f32.mrb[0].mxu0
    %126 = vdwg.mxu0
    %vm127 = vcmask 523264
    %v128 = vsel %vm127, %v122, 0.0
    %v129 = vrot.slane %v128, 4
    %v130 = vadd.f32 %v128, %v129
    %v131 = vrot.slane %v130, 2
    %v132 = vadd.f32 %v130, %v131
    %v133 = vrot.slane %v132, 1
    %v134 = vadd.f32 %v132, %v133
    %v135 = vrcp.pop 8.0
    %v136 = vmul.f32 %v134, %v135
    %v137 = vsub.f32 %v122, %v136
    %v138 = vmul.f32 %v137, %v137
    %v139 = vsel %vm127, %v138, 0.0
    %v140 = vrot.slane %v139, 4
    %v141 = vadd.f32 %v139, %v140
    %v142 = vrot.slane %v141, 2
    %v143 = vadd.f32 %v141, %v142
    %v144 = vrot.slane %v143, 1
    %v145 = vadd.f32 %v143, %v144
    %v146 = vmul.f32 %v145, %v135
    %v147 = vld [vmem:[%s2] sm:$0x1]
    %v148 = vadd.f32 %v146, 1e-05
    %v149 = vrsqrt.pop %v148
    %v150 = vmul.f32 %v147, %v149
    %v151 = vld [vmem:[%s3] sm:$0x1]
    %v152 = vmul.f32 %v136, %v150
    %v153 = vsub.f32 %v151, %v152
    %v155 = vlaneseq
    %v156 = vshrl.u32 %v155, 7
    %v157 = vsub.s32 0, %v156
    %v158 = vrot.slane %v150, %v157
    %v160 = vmul.f32 %v122, %v158
    %v162 = vlaneseq
    %v163 = vshrl.u32 %v162, 7
    %v164 = vsub.s32 0, %v163
    %v165 = vrot.slane %v153, %v164
    %v167 = vadd.f32 %v160, %v165
    %v168 = vmax.f32 %v167, 0.0
    %v169 = vld [vmem:[#allocation2] sm:$0xff]
    %v170 = vpack.c.bf16 %v168, %v168
    %v171 = vld [vmem:[#allocation8] sm:$0xf]
    %v172 = vld [vmem:[#allocation8 + $0x4] sm:$0xf]
    %v173 = vld [vmem:[#allocation8 + $0x8] sm:$0xf]
    %v174 = vld [vmem:[#allocation8 + $0xc] sm:$0xf]
    %v175 = vld [vmem:[#allocation8 + $0x10] sm:$0xf]
    %v176 = vld [vmem:[#allocation8 + $0x14] sm:$0xf]
    %v177 = vld [vmem:[#allocation8 + $0x18] sm:$0xf]
    %v178 = vld [vmem:[#allocation8 + $0x1c] sm:$0xf]
    %v187 = vunpack.c.l.b16 %v171
    %v188 = vunpack.c.l.b16 %v172
    %v189 = vunpack.c.l.b16 %v173
    %v190 = vunpack.c.l.b16 %v174
    %v191 = vunpack.c.l.b16 %v175
    %v192 = vunpack.c.l.b16 %v176
    %v193 = vunpack.c.l.b16 %v177
    %v194 = vunpack.c.l.b16 %v178
    %v195 = vpack.c.b16 %v188, %v187
    %v196 = vpack.c.b16 %v190, %v189
    %v197 = vpack.c.b16 %v192, %v191
    %v198 = vpack.c.b16 %v194, %v193
    %v204 = vsel %vm127, %v170, 0
    %206 = vmatprep.subr.bf16.mxu0 0
    %207 = vmatpush1.bf16.msra.mxu0 %v195
    %208 = vmatprep.subr.bf16.mxu0 0
    %209 = vmatpush1.bf16.msra.mxu0 %v196
    %210 = vmatprep.subr.bf16.mxu0 0
    %211 = vmatpush1.bf16.msra.mxu0 %v197
    %212 = vmatprep.subr.bf16.mxu0 0
    %213 = vmatpush1.bf16.msra.mxu0 %v198
    %214 = vmatprep.subr.bf16.mxu0 0
    %215 = vmatpush1.bf16.msra.mxu0 0
    %216 = vmatprep.subr.bf16.mxu0 0
    %217 = vmatpush1.bf16.msra.mxu0 0
    %218 = vmatprep.subr.bf16.mxu0 0
    %219 = vmatpush1.bf16.msra.mxu0 0
    %220 = vmatprep.subr.bf16.mxu0 0
    %221 = vmatpush1.bf16.msra.mxu0 0
    %222 = vmatprep.subr.bf16.mxu0 0
    %223 = vmatpush1.bf16.msra.mxu0 0
    %224 = vmatprep.subr.bf16.mxu0 0
    %225 = vmatpush1.bf16.msra.mxu0 0
    %226 = vmatprep.subr.bf16.mxu0 0
    %227 = vmatpush1.bf16.msra.mxu0 0
    %228 = vmatprep.subr.bf16.mxu0 0
    %229 = vmatpush1.bf16.msra.mxu0 0
    %230 = vmatprep.subr.bf16.mxu0 0
    %231 = vmatpush1.bf16.msra.mxu0 0
    %232 = vmatprep.subr.bf16.mxu0 0
    %233 = vmatpush1.bf16.msra.mxu0 0
    %234 = vmatprep.subr.bf16.mxu0 0
    %235 = vmatpush1.bf16.msra.mxu0 0
    %236 = vmatprep.subr.bf16.mxu0 0
    %237 = vmatpush1.bf16.msra.mxu0 0
    %238 = vmatprep.mubr.bf16.mxu0 0
    %239 = vmatmul.mubr.bf16.gmra.mrb[0].mxu0 %v204
    %v240 = vpop.f32.mrb[0].mxu0
    %v241 = vadd.f32 0.0, %v240
    %v242 = vpop.f32.mrb[0].mxu0
    %v243 = vpop.f32.mrb[0].mxu0
    %v244 = vpop.f32.mrb[0].mxu0
    %245 = vdwg.mxu0
    %v246 = vadd.f32 %v169, %v241
    %247 = vst [vmem:[#allocation2] sm:$0xff] %v246
    // Predicated region
    $region38: #{tpu_custom_call.1} parent=1 // pred_check
      %p248 = pneg %p61
    $region39: #{tpu_custom_call.1} parent=1 // pred_check_branch
      %250 = sbr.rel (%p248) target = $region41
    $region40: #{tpu_custom_call.1} parent=1 // pred_region
      %v251 = vld [vmem:[#allocation2] sm:$0xff]
      %252 = vst [vmem:[#allocation9] sm:$0xff] %v251
    $region41: #{tpu_custom_call.1} parent=1 // pred_fallthru
      _
    // Predicated region
    $region42: #{tpu_custom_call.1} parent=1 // pred_check
      _
    $region43: #{tpu_custom_call.1} parent=1 // pred_check_branch
      %254 = sbr.rel (0) target = $region45
    $region44: #{tpu_custom_call.1} parent=1 // pred_region
      %s256 = ssub.s32 128, 128
      %257 = vsyncadd [#allocation5], %s256
      %s259 = sshll.u32 [#allocation9], 4
      %s260 = int_to_ptr.vmem [resolvable:$true] %s259
      %262 = dma.vmem_to_hbm [thread:$0]  %s260, 128, %s5, [#allocation5]
    $region45: #{tpu_custom_call.1} parent=1 // pred_fallthru
      _
    // Predicated region
    $region46: #{tpu_custom_call.1} parent=1 // pred_check
      _
    $region47: #{tpu_custom_call.1} parent=1 // pred_check_branch
      %264 = sbr.rel (0) target = $region49
    $region48: #{tpu_custom_call.1} parent=1 // pred_region
      %265 = dma.done [#allocation5], 128
    $region49: #{tpu_custom_call.1} parent=1 // pred_fallthru
      _
    %266 = vsyncpa [#allocation4], 1
    %267 = vsyncpa [#allocation7], 1
    %268 = vsyncpa [#allocation5], 1

</llo_original>
